<compile_context>
chip_gen: v6e
topology: v6e:2x2x1
jax: 0.10.0
libtpu: 0.0.40
codegen_flags: <defaults>
</compile_context>

<pallas_src>
import functools

import jax
import jax.numpy as jnp
from jax.experimental import pallas as pl
from jax.experimental.pallas import tpu as pltpu

LANES = 128
SUBLANES_F32 = 8
# 512 groups -> 2 MiB per f32 input per block; 2 inputs x 2 pipeline buffers
# = 8 MiB, safe on every generation's scoped-VMEM default.
MAX_GROUPS_PER_TILE = 512


def _sublanes_for(*dtypes):
    """Dtype-aware sublane packing: f32 -> 8, bf16/f16 -> 16, int8/fp8 -> 32."""
    itemsize = max(jnp.dtype(d).itemsize for d in dtypes)
    itemsize = min(itemsize, 4)
    return SUBLANES_F32 * (4 // itemsize)


def _sigmoid(x):
    # Exact sigmoid via tanh: one EUP push/element instead of exp + reciprocal.
    return 0.5 * (1.0 + jnp.tanh(0.5 * x))


def _iou_partial_kernel(x_ref, t_ref, inter_ref, total_ref, *,
                        threshold, valid_groups_last, has_partial_last):
    """One grid step: lane-dense partial sums over the group axis.

    x_ref / t_ref        : (group_tile, sublanes, 128) input tiles (native dtype).
    inter_ref / total_ref: (1, sublanes, 128) lane-dense per-block partial sums.
    """
    x = x_ref[...].astype(jnp.float32)
    t = t_ref[...].astype(jnp.float32)

    probs = _sigmoid(x)
    t_bin = (t > threshold).astype(jnp.float32)

    def _write(p, tb):
        # Reduce only over the leading (group) axis: pure elementwise vreg
        # adds, no cross-lane / cross-sublane XLU work in the hot loop.
        inter_ref[0, :, :] = jnp.sum(p * tb, axis=0)
        total_ref[0, :, :] = jnp.sum(p + tb, axis=0)

    if has_partial_last:
        # Only the last grid step overruns the (unit-aligned) inputs; gate the
        # group-level mask behind pl.when so every other block is mask-free.
        last = pl.num_programs(0) - 1
        pid = pl.program_id(0)

        @pl.when(pid != last)
        def _():
            _write(probs, t_bin)

        @pl.when(pid == last)
        def _():
            # Rows >= valid_groups_last are Pallas out-of-bounds reads with
            # unspecified contents: zero them *before* the products / sums.
            g = jax.lax.broadcasted_iota(jnp.int32, probs.shape, 0)
            valid = g < valid_groups_last
            _write(jnp.where(valid, probs, 0.0), jnp.where(valid, t_bin, 0.0))
    else:
        _write(probs, t_bin)


def iou_pallas(inputs, targets, eps=1e-7, threshold=0.5):
    assert inputs.shape == targets.shape
    x = inputs.reshape(-1)
    t = targets.reshape(-1)
    n = x.shape[0]

    sublanes = _sublanes_for(x.dtype, t.dtype)
    unit = sublanes * LANES
    groups = n // unit
    n_aligned = groups * unit

    intersection = jnp.zeros((), jnp.float32)
    total = jnp.zeros((), jnp.float32)

    if groups > 0:
        group_tile = min(MAX_GROUPS_PER_TILE, groups)
        num_tiles = pl.cdiv(groups, group_tile)
        valid_groups_last = groups - (num_tiles - 1) * group_tile
        has_partial_last = valid_groups_last != group_tile

        # Free views (no jnp.pad copy): the kernel streams the unit-aligned
        # prefix; the < unit element tail is handled below with plain jnp.
        x3 = x[:n_aligned].reshape(groups, sublanes, LANES)
        t3 = t[:n_aligned].reshape(groups, sublanes, LANES)

        kernel = functools.partial(
            _iou_partial_kernel,
            threshold=threshold,
            valid_groups_last=valid_groups_last,
            has_partial_last=has_partial_last,
        )

        # 2 pipeline buffers x (both input blocks + both output blocks) + headroom.
        block_in_bytes = group_tile * sublanes * LANES * (
            x3.dtype.itemsize + t3.dtype.itemsize)
        block_out_bytes = 2 * sublanes * LANES * 4
        vmem_limit = int(2 * (block_in_bytes + block_out_bytes) + (8 << 20))

        inter_parts, total_parts = pl.pallas_call(
            kernel,
            out_shape=(
                jax.ShapeDtypeStruct((num_tiles, sublanes, LANES), jnp.float32),
                jax.ShapeDtypeStruct((num_tiles, sublanes, LANES), jnp.float32),
            ),
            grid=(num_tiles,),
            in_specs=[
                pl.BlockSpec((group_tile, sublanes, LANES), lambda i: (i, 0, 0)),
                pl.BlockSpec((group_tile, sublanes, LANES), lambda i: (i, 0, 0)),
            ],
            out_specs=(
                pl.BlockSpec((1, sublanes, LANES), lambda i: (i, 0, 0)),
                pl.BlockSpec((1, sublanes, LANES), lambda i: (i, 0, 0)),
            ),
            compiler_params=pltpu.CompilerParams(
                dimension_semantics=("parallel",),
                vmem_limit_bytes=vmem_limit,
            ),
        )(x3, t3)

        intersection = jnp.sum(inter_parts)
        total = jnp.sum(total_parts)

    if n_aligned != n:
        # < sublanes*128 trailing elements: plain jnp, no pad / no extra HBM
        # pass over the full arrays.
        xt = x[n_aligned:].astype(jnp.float32)
        tt = (t[n_aligned:].astype(jnp.float32) > threshold).astype(jnp.float32)
        pt = _sigmoid(xt)
        intersection = intersection + jnp.sum(pt * tt)
        total = total + jnp.sum(pt + tt)

    union = total - intersection + eps
    return (intersection + eps) / union


def iou_reference(inputs, targets, eps=1e-7, threshold=0.5):
    probs = jax.nn.sigmoid(inputs.astype(jnp.float32)).reshape(-1)
    tb = (targets.astype(jnp.float32).reshape(-1) > threshold).astype(jnp.float32)
    intersection = jnp.sum(probs * tb)
    total = jnp.sum(probs + tb)
    union = total - intersection + eps
    return (intersection + eps) / union


if __name__ == "__main__":
    key = jax.random.PRNGKey(0)
    keys = jax.random.split(key, 10)

    def _check(i, shape, dtype):
        a = jax.random.normal(keys[2 * i], shape, dtype=dtype)
        b = jax.random.uniform(keys[2 * i + 1], shape, dtype=dtype)
        got = iou_pallas(a, b)
        jax.block_until_ready(got)
        want = iou_reference(a, b)
        assert jnp.allclose(got, want, atol=1e-5, rtol=1e-5), (shape, got, want)

    # Primary: segmentation-style logits / targets (lane-aligned, single tile).
    _check(0, (2, 4, 16, 16), jnp.float32)
    # Ragged: kernel on aligned prefix + jnp tail (no pad, no hot-path mask).
    _check(1, (2, 4, 16, 17), jnp.float32)
    # Tiny ragged input smaller than one (sublanes, 128) unit -> pure jnp path.
    _check(2, (2, 3, 7, 11), jnp.float32)
    # Multi-tile "parallel" grid with a partial last block (pl.when-gated mask).
    _check(3, (2, 4, 256, 300), jnp.float32)
    # bf16 caller -> (groups, 16, 128) packing, halved HBM traffic.
    _check(4, (2, 4, 32, 32), jnp.bfloat16)

    print("KERNEL_OK")
</pallas_src>

<mosaic_0001>
module attributes {stable_mosaic.version = 11 : i64} {
  func.func @_iou_partial_kernel(%arg0: i32, %arg1: memref<2x8x128xf32, #tpu.memory_space<vmem>>, %arg2: memref<2x8x128xf32, #tpu.memory_space<vmem>>, %arg3: memref<1x8x128xf32, #tpu.memory_space<vmem>>, %arg4: memref<1x8x128xf32, #tpu.memory_space<vmem>>) attributes {dimension_semantics = [#tpu.dimension_semantics<parallel>], iteration_bounds = array<i64: 1>, scalar_prefetch = 0 : i64, scratch_operands = 0 : i64, tpu.core_type = #tpu.core_type<tc>, window_params = [{transform_indices = @transform_0, window_bounds = array<i64: 2, 8, 128>}, {transform_indices = @transform_1, window_bounds = array<i64: 2, 8, 128>}, {transform_indices = @transform_2, window_bounds = array<i64: 1, 8, 128>}, {transform_indices = @transform_3, window_bounds = array<i64: 1, 8, 128>}]} {
    %c0 = arith.constant 0 : index
    %c0_0 = arith.constant 0 : index
    %c0_1 = arith.constant 0 : index
    %0 = vector.load %arg1[%c0, %c0_0, %c0_1] : memref<2x8x128xf32, #tpu.memory_space<vmem>>, vector<2x8x128xf32>
    %c0_2 = arith.constant 0 : index
    %c0_3 = arith.constant 0 : index
    %c0_4 = arith.constant 0 : index
    %1 = vector.load %arg2[%c0_2, %c0_3, %c0_4] : memref<2x8x128xf32, #tpu.memory_space<vmem>>, vector<2x8x128xf32>
    %cst = arith.constant 5.000000e-01 : f32
    %2 = vector.broadcast %cst : f32 to vector<2x8x128xf32>
    %3 = arith.mulf %2, %0 : vector<2x8x128xf32>
    %4 = math.tanh %3 : vector<2x8x128xf32>
    %cst_5 = arith.constant 1.000000e+00 : f32
    %5 = vector.broadcast %cst_5 : f32 to vector<2x8x128xf32>
    %6 = arith.addf %5, %4 : vector<2x8x128xf32>
    %cst_6 = arith.constant 5.000000e-01 : f32
    %7 = vector.broadcast %cst_6 : f32 to vector<2x8x128xf32>
    %8 = arith.mulf %7, %6 : vector<2x8x128xf32>
    %cst_7 = arith.constant 5.000000e-01 : f32
    %9 = vector.broadcast %cst_7 : f32 to vector<2x8x128xf32>
    %10 = arith.cmpf ogt, %1, %9 : vector<2x8x128xf32>
    %11 = arith.extui %10 : vector<2x8x128xi1> to vector<2x8x128xi32>
    %12 = arith.sitofp %11 : vector<2x8x128xi32> to vector<2x8x128xf32>
    %13 = arith.mulf %8, %12 : vector<2x8x128xf32>
    %cst_8 = arith.constant dense<0.000000e+00> : vector<8x128xf32>
    %14 = vector.multi_reduction <add>, %13, %cst_8 [0] : vector<2x8x128xf32> to vector<8x128xf32>
    %c0_9 = arith.constant 0 : index
    %c0_10 = arith.constant 0 : index
    %c0_11 = arith.constant 0 : index
    %15 = vector.load %arg3[%c0_9, %c0_10, %c0_11] : memref<1x8x128xf32, #tpu.memory_space<vmem>>, vector<1x8x128xf32>
    %16 = vector.shape_cast %15 : vector<1x8x128xf32> to vector<8x128xf32>
    %17 = vector.shape_cast %14 : vector<8x128xf32> to vector<1x8x128xf32>
    tpu.vector_store %arg3[%c0_9, %c0_10, %c0_11], %17 {strides = array<i32>} : memref<1x8x128xf32, #tpu.memory_space<vmem>>, vector<1x8x128xf32>,
    %18 = arith.addf %8, %12 : vector<2x8x128xf32>
    %cst_12 = arith.constant dense<0.000000e+00> : vector<8x128xf32>
    %19 = vector.multi_reduction <add>, %18, %cst_12 [0] : vector<2x8x128xf32> to vector<8x128xf32>
    %c0_13 = arith.constant 0 : index
    %c0_14 = arith.constant 0 : index
    %c0_15 = arith.constant 0 : index
    %20 = vector.load %arg4[%c0_13, %c0_14, %c0_15] : memref<1x8x128xf32, #tpu.memory_space<vmem>>, vector<1x8x128xf32>
    %21 = vector.shape_cast %20 : vector<1x8x128xf32> to vector<8x128xf32>
    %22 = vector.shape_cast %19 : vector<8x128xf32> to vector<1x8x128xf32>
    tpu.vector_store %arg4[%c0_13, %c0_14, %c0_15], %22 {strides = array<i32>} : memref<1x8x128xf32, #tpu.memory_space<vmem>>, vector<1x8x128xf32>,
    return
  }
  func.func @transform_0(%arg0: i32) -> (i32, i32, i32) {
    %c0_i32 = arith.constant 0 : i32
    %c0_i32_0 = arith.constant 0 : i32
    %c0_i32_1 = arith.constant 0 : i32
    return %arg0, %c0_i32, %c0_i32_0 : i32, i32, i32
  }
  func.func @transform_1(%arg0: i32) -> (i32, i32, i32) {
    %c0_i32 = arith.constant 0 : i32
    %c0_i32_0 = arith.constant 0 : i32
    %c0_i32_1 = arith.constant 0 : i32
    return %arg0, %c0_i32, %c0_i32_0 : i32, i32, i32
  }
  func.func @transform_2(%arg0: i32) -> (i32, i32, i32) {
    %c0_i32 = arith.constant 0 : i32
    %c0_i32_0 = arith.constant 0 : i32
    %c0_i32_1 = arith.constant 0 : i32
    return %arg0, %c0_i32, %c0_i32_0 : i32, i32, i32
  }
  func.func @transform_3(%arg0: i32) -> (i32, i32, i32) {
    %c0_i32 = arith.constant 0 : i32
    %c0_i32_0 = arith.constant 0 : i32
    %c0_i32_1 = arith.constant 0 : i32
    return %arg0, %c0_i32, %c0_i32_0 : i32, i32, i32
  }
}

</mosaic_0001>

<llo_original>
// kernel: tpu_custom_call.1
$region0: #{tpu_custom_call.1}
  #allocation0 [shape = 'u32[]', space=smem, size = 0x4, offset = 0x4, fixed_abs, tag = 'smem constant byte address 0x4 - core index']
  #allocation1 [shape = 'u32[144,128]{1,0:T(1,128)}', space=vmem, size = 0x12000, scoped, tag = 'internal scratch']
  %s0 = inlined_call_operand.hbm [shape: f32[2,8,128], index: 0, kind: input, shape index: {}]
  %s1 = inlined_call_operand.hbm [shape: f32[2,8,128], index: 1, kind: input, shape index: {}]
  %s2 = inlined_call_operand.hbm [shape: f32[1,8,128], index: 2, kind: output, shape index: {0}]
  %s3 = inlined_call_operand.hbm [shape: f32[1,8,128], index: 3, kind: output, shape index: {1}]
  %4 = xla_tuple %s2, %s3
  %s5 = sld [smem:[#allocation0]]
  $region34: #{tpu_custom_call.1} parent=0
    _
  %s7 = ssub.s32 1, %s5
  %s8 = scalar_select 0, %s7, %s5
  $region1: #{tpu_custom_call.1} parent=0
    #allocation2 [shape = 'u8[8192]{0}', space=vmem, size = 0x2000, scoped, tag = 'input window, operand 0, single buffered']
    #allocation3 [shape = 's32[1]{0}', space=sflag, size = 0x4, scoped, tag = 'scoped memory for tpu_custom_call.1']
    #allocation4 [shape = 's32[1]{0}', space=sflag, size = 0x4, scoped, tag = 'scoped memory for tpu_custom_call.1']
    #allocation5 [shape = 'u8[8192]{0}', space=vmem, size = 0x2000, scoped, tag = 'input window, operand 1, single buffered']
    #allocation6 [shape = 's32[1]{0}', space=sflag, size = 0x4, scoped, tag = 'scoped memory for tpu_custom_call.1']
    #allocation7 [shape = 'u8[4096]{0}', space=vmem, size = 0x1000, scoped, tag = 'output window, operand 0, single buffered']
    #allocation8 [shape = 'u8[4096]{0}', space=vmem, size = 0x1000, scoped, tag = 'output window, operand 1, single buffered']
    #allocation9 [shape = 's32[1]{0}', space=sflag, size = 0x4, scoped, tag = 'scoped memory for tpu_custom_call.1']
    %9 = vsyncpa [#allocation3], 0
    %10 = vsyncpa [#allocation6], 0
    %11 = vsyncpa [#allocation4], 0
    %12 = vsyncpa [#allocation9], 0
    // Predicated region
    $region2: #{tpu_custom_call.1} parent=1 // pred_check
      _
    $region3: #{tpu_custom_call.1} parent=1 // pred_check_branch
      %14 = sbr.rel (0) target = $region5
    $region4: #{tpu_custom_call.1} parent=1 // pred_region
      %s16 = ssub.s32 256, 256
      %17 = vsyncadd [#allocation3], %s16
      %s18 = sshll.u32 [#allocation2], 4
      %s19 = int_to_ptr.vmem [resolvable:$true] %s18
      %24 = dma.hbm_to_vmem [thread:$0]  %s0, 256, %s19, [#allocation3], 128, 128, 8
    $region5: #{tpu_custom_call.1} parent=1 // pred_fallthru
      _
    // Predicated region
    $region6: #{tpu_custom_call.1} parent=1 // pred_check
      _
    $region7: #{tpu_custom_call.1} parent=1 // pred_check_branch
      %26 = sbr.rel (0) target = $region9
    $region8: #{tpu_custom_call.1} parent=1 // pred_region
      %s28 = ssub.s32 256, 256
      %29 = vsyncadd [#allocation6], %s28
      %s30 = sshll.u32 [#allocation5], 4
      %s31 = int_to_ptr.vmem [resolvable:$true] %s30
      %36 = dma.hbm_to_vmem [thread:$0]  %s1, 256, %s31, [#allocation6], 128, 128, 8
    $region9: #{tpu_custom_call.1} parent=1 // pred_fallthru
      _
    // Predicated region
    $region10: #{tpu_custom_call.1} parent=1 // pred_check
      _
    $region11: #{tpu_custom_call.1} parent=1 // pred_check_branch
      %38 = sbr.rel (0) target = $region13
    $region12: #{tpu_custom_call.1} parent=1 // pred_region
      %39 = dma.done [#allocation3], 256
    $region13: #{tpu_custom_call.1} parent=1 // pred_fallthru
      _
    // Predicated region
    $region14: #{tpu_custom_call.1} parent=1 // pred_check
      _
    $region15: #{tpu_custom_call.1} parent=1 // pred_check_branch
      %41 = sbr.rel (0) target = $region17
    $region16: #{tpu_custom_call.1} parent=1 // pred_region
      %42 = dma.done [#allocation6], 256
    $region17: #{tpu_custom_call.1} parent=1 // pred_fallthru
      _
    %v43 = vld [vmem:[#allocation2] sm:$0xff]
    %v44 = vld [vmem:[#allocation2 + $0x8] sm:$0xff]
    %v45 = vld [vmem:[#allocation5] sm:$0xff]
    %v46 = vld [vmem:[#allocation5 + $0x8] sm:$0xff]
    %v47 = vmul.f32 %v43, 0.5
    %v48 = vmul.f32 %v44, 0.5
    %v49 = vtanh.pop %v47
    %v50 = vtanh.pop %v48
    %v51 = vadd.f32 %v49, 1.0
    %v52 = vadd.f32 %v50, 1.0
    %v53 = vmul.f32 %v51, 0.5
    %v54 = vmul.f32 %v52, 0.5
    %vm55 = vcmp.gt.f32.partialorder %v45, 0.5
    %vm56 = vcmp.gt.f32.partialorder %v46, 0.5
    %v57 = vsel %vm55, 1, 0
    %v58 = vsel %vm56, 1, 0
    %v59 = vcvt.s32.f32 %v57
    %v60 = vcvt.s32.f32 %v58
    %v61 = vmul.f32 %v53, %v59
    %v62 = vmul.f32 %v54, %v60
    %v63 = vadd.f32 %v61, %v62
    %64 = vst [vmem:[#allocation7] sm:$0xff] %v63
    %v65 = vadd.f32 %v53, %v59
    %v66 = vadd.f32 %v54, %v60
    %v67 = vadd.f32 %v65, %v66
    %68 = vst [vmem:[#allocation8] sm:$0xff] %v67
    // Predicated region
    $region18: #{tpu_custom_call.1} parent=1 // pred_check
      _
    $region19: #{tpu_custom_call.1} parent=1 // pred_check_branch
      %70 = sbr.rel (0) target = $region21
    $region20: #{tpu_custom_call.1} parent=1 // pred_region
      %s72 = ssub.s32 128, 128
      %73 = vsyncadd [#allocation4], %s72
      %s75 = sshll.u32 [#allocation7], 4
      %s76 = int_to_ptr.vmem [resolvable:$true] %s75
      %78 = dma.vmem_to_hbm [thread:$0]  %s76, 128, %s2, [#allocation4]
    $region21: #{tpu_custom_call.1} parent=1 // pred_fallthru
      _
    // Predicated region
    $region22: #{tpu_custom_call.1} parent=1 // pred_check
      _
    $region23: #{tpu_custom_call.1} parent=1 // pred_check_branch
      %80 = sbr.rel (0) target = $region25
    $region24: #{tpu_custom_call.1} parent=1 // pred_region
      %s82 = ssub.s32 128, 128
      %83 = vsyncadd [#allocation9], %s82
      %s85 = sshll.u32 [#allocation8], 4
      %s86 = int_to_ptr.vmem [resolvable:$true] %s85
      %88 = dma.vmem_to_hbm [thread:$0]  %s86, 128, %s3, [#allocation9]
    $region25: #{tpu_custom_call.1} parent=1 // pred_fallthru
      _
    // Predicated region
    $region26: #{tpu_custom_call.1} parent=1 // pred_check
      _
    $region27: #{tpu_custom_call.1} parent=1 // pred_check_branch
      %90 = sbr.rel (0) target = $region29
    $region28: #{tpu_custom_call.1} parent=1 // pred_region
      %91 = dma.done [#allocation4], 128
    $region29: #{tpu_custom_call.1} parent=1 // pred_fallthru
      _
    // Predicated region
    $region30: #{tpu_custom_call.1} parent=1 // pred_check
      _
    $region31: #{tpu_custom_call.1} parent=1 // pred_check_branch
      %93 = sbr.rel (0) target = $region33
    $region32: #{tpu_custom_call.1} parent=1 // pred_region
      %94 = dma.done [#allocation9], 128
    $region33: #{tpu_custom_call.1} parent=1 // pred_fallthru
      _
    %95 = vsyncpa [#allocation3], 1
    %96 = vsyncpa [#allocation6], 1
    %97 = vsyncpa [#allocation4], 1
    %98 = vsyncpa [#allocation9], 1

</llo_original>
